<compile_context>
chip_gen: v7x
topology: tpu7x:2x2x1
jax: 0.10.0
libtpu: 0.0.40
codegen_flags: <defaults>
</compile_context>

<pallas_src>
import jax
import jax.numpy as jnp
from jax import lax
from jax.experimental import pallas as pl
from jax.experimental.pallas import tpu as pltpu

VOCAB = 32000   # from torch.nn.Embedding(32000, 4096)
DIM = 4096


def _emb_gather_kernel(ids_ref, table_hbm, out_ref, sem):
    # ids_ref:   SMEM (n_pad,) int32 token ids (scalar-prefetched)
    # table_hbm: raw HBM ref of the (VOCAB, DIM) embedding table
    # out_ref:   (T, DIM) VMEM output block for this token block
    # sem:       single DMA semaphore shared by all T row gathers
    t_block = out_ref.shape[0]
    base = pl.multiple_of(pl.program_id(0) * t_block, t_block)

    def _issue(t, carry):
        tok = ids_ref[base + t]                       # scalar SMEM read
        pltpu.make_async_copy(table_hbm.at[tok], out_ref.at[t], sem).start()
        return carry

    def _wait(t, carry):
        # Reconstructed descriptor only supplies the per-row byte count for
        # the semaphore wait; all T copies signal the same semaphore.
        pltpu.make_async_copy(table_hbm.at[0], out_ref.at[t], sem).wait()
        return carry

    # Start every gather of this block before waiting on any, so T x 16 KiB
    # of HBM reads are concurrently in flight (hides HBM latency).
    lax.fori_loop(0, t_block, _issue, 0, unroll=8)
    lax.fori_loop(0, t_block, _wait, 0, unroll=8)


def _emb_lookup_chunk(ids_chunk, table, block_tokens):
    """Run the gather kernel over one flat chunk of token ids."""
    n = ids_chunk.shape[0]
    _, dim = table.shape
    itemsize = jnp.dtype(table.dtype).itemsize

    n_blocks = -(-n // block_tokens)
    n_pad = n_blocks * block_tokens
    if n_pad != n:
        # Pad with id 0 (a valid row); padded outputs are sliced off below.
        ids_chunk = jnp.pad(ids_chunk, (0, n_pad - n))

    out = pl.pallas_call(
        _emb_gather_kernel,
        out_shape=jax.ShapeDtypeStruct((n_pad, dim), table.dtype),
        grid_spec=pltpu.PrefetchScalarGridSpec(
            num_scalar_prefetch=1,                 # token ids land in SMEM
            grid=(n_blocks,),                      # one step per T-token block
            in_specs=[
                pl.BlockSpec(memory_space=pl.ANY)  # table stays in HBM
            ],
            out_specs=pl.BlockSpec((block_tokens, dim),
                                   lambda i, ids_s: (i, 0)),
            scratch_shapes=[pltpu.SemaphoreType.DMA(())],
        ),
        compiler_params=pltpu.CompilerParams(
            dimension_semantics=("parallel",),     # blocks independent -> 2 TCs on v7x
        ),
        cost_estimate=pl.CostEstimate(
            flops=0,
            transcendentals=0,
            bytes_accessed=2 * n_pad * dim * itemsize + n_pad * 4,
        ),
    )(ids_chunk, table)

    if n_pad != n:
        out = out[:n]
    return out


def embedding_lookup(ids, table, *, block_tokens=128, max_tokens_per_call=32768):
    """Pallas equivalent of torch.nn.Embedding forward: table[ids]."""
    n = int(ids.size)
    _, dim = table.shape
    itemsize = jnp.dtype(table.dtype).itemsize

    # Sublane pack factor of the table dtype (8 f32 / 16 bf16 / 32 int8-fp8).
    # Keeping T a multiple of it keeps the output block sublane-dense
    # (full-vreg, unmasked writeback) for any table dtype.
    pack = max(8, 32 // itemsize)

    # Tokens gathered per grid step.  Tuning guide: v5e ~64, v6e ~128,
    # v7x ~128-256 (token-block axis is sharded across both TensorCores).
    t = max(pack, (block_tokens // pack) * pack)
    # Clamp so small inputs still produce >= 2 grid blocks (megacore) and
    # padding waste stays bounded.
    half_up = -(-n // 2)
    t = min(t, max(pack, -(-half_up // pack) * pack))

    ids_flat = ids.reshape((n,)).astype(jnp.int32)

    # Chunk very long sequences so the scalar-prefetched id vector stays small
    # in SMEM (1D SMEM arrays pad to next_pow2(4N) bytes).
    chunk = max(t, (max_tokens_per_call // t) * t)
    pieces = [
        _emb_lookup_chunk(ids_flat[s:s + chunk], table, t)
        for s in range(0, n, chunk)
    ]
    out_flat = pieces[0] if len(pieces) == 1 else jnp.concatenate(pieces, axis=0)
    return out_flat.reshape(ids.shape + (dim,))


if __name__ == "__main__":
    key = jax.random.PRNGKey(0)
    k_ids, k_w = jax.random.split(key)

    # Small input shape consistent with forward(x): integer token ids.
    batch, seq = 2, 8
    x = jax.random.randint(k_ids, (batch, seq), 0, VOCAB, dtype=jnp.int32)

    # Deterministic synthetic weights, shape from the module's __init__
    # (torch.nn.Embedding(32000, 4096) -> weight of shape (32000, 4096)).
    table = jax.random.normal(k_w, (VOCAB, DIM), dtype=jnp.float32)

    y = embedding_lookup(x, table)
    y = jax.block_until_ready(y)

    # Verify against plain JAX gather (reference semantics of nn.Embedding).
    ref = table[x]
    assert y.shape == (batch, seq, DIM), y.shape
    assert y.dtype == table.dtype, y.dtype
    assert jnp.array_equal(y, ref)

    print("KERNEL_OK")
</pallas_src>

<mosaic_0001>
module attributes {stable_mosaic.version = 11 : i64} {
  func.func @_emb_gather_kernel(%arg0: i32, %arg1: memref<16xi32, #tpu.memory_space<smem>>, %arg2: memref<32000x4096xf32, #tpu.memory_space<any>>, %arg3: memref<8x4096xf32, #tpu.memory_space<vmem>>, %arg4: memref<!tpu.dma_semaphore, #tpu.memory_space<semaphore_mem>>) attributes {dimension_semantics = [#tpu.dimension_semantics<parallel>], iteration_bounds = array<i64: 2>, scalar_prefetch = 1 : i64, scratch_operands = 1 : i64, tpu.core_type = #tpu.core_type<tc>, window_params = [{}, {transform_indices = @transform_1, window_bounds = array<i64: 8, 4096>}]} {
    %c8_i32 = arith.constant 8 : i32
    %0 = arith.muli %arg0, %c8_i32 : i32
    %1 = tpu.assume_multiple %0, 8 : i32
    %c0_i32 = arith.constant 0 : i32
    %2 = arith.addi %1, %c0_i32 : i32
    %3 = arith.index_cast %2 : i32 to index
    %4 = memref.load %arg1[%3] : memref<16xi32, #tpu.memory_space<smem>>
    %c0_i32_0 = arith.constant 0 : i32
    %5 = tpu.memref_slice %arg2[%4, %c0_i32_0] : memref<32000x4096xf32, #tpu.memory_space<any>> -> memref<1x4096xf32, #tpu.memory_space<any>>
    %6 = tpu.memref_squeeze %5 : memref<1x4096xf32, #tpu.memory_space<any>> -> memref<4096xf32, #tpu.memory_space<any>>
    %c0_i32_1 = arith.constant 0 : i32
    %7 = tpu.memref_slice %arg3[%c0_i32, %c0_i32_1] : memref<8x4096xf32, #tpu.memory_space<vmem>> -> memref<1x4096xf32, #tpu.memory_space<vmem>>
    %8 = tpu.memref_squeeze %7 : memref<1x4096xf32, #tpu.memory_space<vmem>> -> memref<4096xf32, #tpu.memory_space<vmem>>
    tpu.enqueue_dma source(%6 : memref<4096xf32, #tpu.memory_space<any>>) target(%8 : memref<4096xf32, #tpu.memory_space<vmem>>) target_semaphore(%arg4 : memref<!tpu.dma_semaphore, #tpu.memory_space<semaphore_mem>>)
    %c1_i32 = arith.constant 1 : i32
    %9 = arith.addi %1, %c1_i32 : i32
    %10 = arith.index_cast %9 : i32 to index
    %11 = memref.load %arg1[%10] : memref<16xi32, #tpu.memory_space<smem>>
    %c0_i32_2 = arith.constant 0 : i32
    %12 = tpu.memref_slice %arg2[%11, %c0_i32_2] : memref<32000x4096xf32, #tpu.memory_space<any>> -> memref<1x4096xf32, #tpu.memory_space<any>>
    %13 = tpu.memref_squeeze %12 : memref<1x4096xf32, #tpu.memory_space<any>> -> memref<4096xf32, #tpu.memory_space<any>>
    %c0_i32_3 = arith.constant 0 : i32
    %14 = tpu.memref_slice %arg3[%c1_i32, %c0_i32_3] : memref<8x4096xf32, #tpu.memory_space<vmem>> -> memref<1x4096xf32, #tpu.memory_space<vmem>>
    %15 = tpu.memref_squeeze %14 : memref<1x4096xf32, #tpu.memory_space<vmem>> -> memref<4096xf32, #tpu.memory_space<vmem>>
    tpu.enqueue_dma source(%13 : memref<4096xf32, #tpu.memory_space<any>>) target(%15 : memref<4096xf32, #tpu.memory_space<vmem>>) target_semaphore(%arg4 : memref<!tpu.dma_semaphore, #tpu.memory_space<semaphore_mem>>)
    %c2_i32 = arith.constant 2 : i32
    %16 = arith.addi %1, %c2_i32 : i32
    %17 = arith.index_cast %16 : i32 to index
    %18 = memref.load %arg1[%17] : memref<16xi32, #tpu.memory_space<smem>>
    %c0_i32_4 = arith.constant 0 : i32
    %19 = tpu.memref_slice %arg2[%18, %c0_i32_4] : memref<32000x4096xf32, #tpu.memory_space<any>> -> memref<1x4096xf32, #tpu.memory_space<any>>
    %20 = tpu.memref_squeeze %19 : memref<1x4096xf32, #tpu.memory_space<any>> -> memref<4096xf32, #tpu.memory_space<any>>
    %c0_i32_5 = arith.constant 0 : i32
    %21 = tpu.memref_slice %arg3[%c2_i32, %c0_i32_5] : memref<8x4096xf32, #tpu.memory_space<vmem>> -> memref<1x4096xf32, #tpu.memory_space<vmem>>
    %22 = tpu.memref_squeeze %21 : memref<1x4096xf32, #tpu.memory_space<vmem>> -> memref<4096xf32, #tpu.memory_space<vmem>>
    tpu.enqueue_dma source(%20 : memref<4096xf32, #tpu.memory_space<any>>) target(%22 : memref<4096xf32, #tpu.memory_space<vmem>>) target_semaphore(%arg4 : memref<!tpu.dma_semaphore, #tpu.memory_space<semaphore_mem>>)
    %c3_i32 = arith.constant 3 : i32
    %23 = arith.addi %1, %c3_i32 : i32
    %24 = arith.index_cast %23 : i32 to index
    %25 = memref.load %arg1[%24] : memref<16xi32, #tpu.memory_space<smem>>
    %c0_i32_6 = arith.constant 0 : i32
    %26 = tpu.memref_slice %arg2[%25, %c0_i32_6] : memref<32000x4096xf32, #tpu.memory_space<any>> -> memref<1x4096xf32, #tpu.memory_space<any>>
    %27 = tpu.memref_squeeze %26 : memref<1x4096xf32, #tpu.memory_space<any>> -> memref<4096xf32, #tpu.memory_space<any>>
    %c0_i32_7 = arith.constant 0 : i32
    %28 = tpu.memref_slice %arg3[%c3_i32, %c0_i32_7] : memref<8x4096xf32, #tpu.memory_space<vmem>> -> memref<1x4096xf32, #tpu.memory_space<vmem>>
    %29 = tpu.memref_squeeze %28 : memref<1x4096xf32, #tpu.memory_space<vmem>> -> memref<4096xf32, #tpu.memory_space<vmem>>
    tpu.enqueue_dma source(%27 : memref<4096xf32, #tpu.memory_space<any>>) target(%29 : memref<4096xf32, #tpu.memory_space<vmem>>) target_semaphore(%arg4 : memref<!tpu.dma_semaphore, #tpu.memory_space<semaphore_mem>>)
    %c4_i32 = arith.constant 4 : i32
    %30 = arith.addi %1, %c4_i32 : i32
    %31 = arith.index_cast %30 : i32 to index
    %32 = memref.load %arg1[%31] : memref<16xi32, #tpu.memory_space<smem>>
    %c0_i32_8 = arith.constant 0 : i32
    %33 = tpu.memref_slice %arg2[%32, %c0_i32_8] : memref<32000x4096xf32, #tpu.memory_space<any>> -> memref<1x4096xf32, #tpu.memory_space<any>>
    %34 = tpu.memref_squeeze %33 : memref<1x4096xf32, #tpu.memory_space<any>> -> memref<4096xf32, #tpu.memory_space<any>>
    %c0_i32_9 = arith.constant 0 : i32
    %35 = tpu.memref_slice %arg3[%c4_i32, %c0_i32_9] : memref<8x4096xf32, #tpu.memory_space<vmem>> -> memref<1x4096xf32, #tpu.memory_space<vmem>>
    %36 = tpu.memref_squeeze %35 : memref<1x4096xf32, #tpu.memory_space<vmem>> -> memref<4096xf32, #tpu.memory_space<vmem>>
    tpu.enqueue_dma source(%34 : memref<4096xf32, #tpu.memory_space<any>>) target(%36 : memref<4096xf32, #tpu.memory_space<vmem>>) target_semaphore(%arg4 : memref<!tpu.dma_semaphore, #tpu.memory_space<semaphore_mem>>)
    %c5_i32 = arith.constant 5 : i32
    %37 = arith.addi %1, %c5_i32 : i32
    %38 = arith.index_cast %37 : i32 to index
    %39 = memref.load %arg1[%38] : memref<16xi32, #tpu.memory_space<smem>>
    %c0_i32_10 = arith.constant 0 : i32
    %40 = tpu.memref_slice %arg2[%39, %c0_i32_10] : memref<32000x4096xf32, #tpu.memory_space<any>> -> memref<1x4096xf32, #tpu.memory_space<any>>
    %41 = tpu.memref_squeeze %40 : memref<1x4096xf32, #tpu.memory_space<any>> -> memref<4096xf32, #tpu.memory_space<any>>
    %c0_i32_11 = arith.constant 0 : i32
    %42 = tpu.memref_slice %arg3[%c5_i32, %c0_i32_11] : memref<8x4096xf32, #tpu.memory_space<vmem>> -> memref<1x4096xf32, #tpu.memory_space<vmem>>
    %43 = tpu.memref_squeeze %42 : memref<1x4096xf32, #tpu.memory_space<vmem>> -> memref<4096xf32, #tpu.memory_space<vmem>>
    tpu.enqueue_dma source(%41 : memref<4096xf32, #tpu.memory_space<any>>) target(%43 : memref<4096xf32, #tpu.memory_space<vmem>>) target_semaphore(%arg4 : memref<!tpu.dma_semaphore, #tpu.memory_space<semaphore_mem>>)
    %c6_i32 = arith.constant 6 : i32
    %44 = arith.addi %1, %c6_i32 : i32
    %45 = arith.index_cast %44 : i32 to index
    %46 = memref.load %arg1[%45] : memref<16xi32, #tpu.memory_space<smem>>
    %c0_i32_12 = arith.constant 0 : i32
    %47 = tpu.memref_slice %arg2[%46, %c0_i32_12] : memref<32000x4096xf32, #tpu.memory_space<any>> -> memref<1x4096xf32, #tpu.memory_space<any>>
    %48 = tpu.memref_squeeze %47 : memref<1x4096xf32, #tpu.memory_space<any>> -> memref<4096xf32, #tpu.memory_space<any>>
    %c0_i32_13 = arith.constant 0 : i32
    %49 = tpu.memref_slice %arg3[%c6_i32, %c0_i32_13] : memref<8x4096xf32, #tpu.memory_space<vmem>> -> memref<1x4096xf32, #tpu.memory_space<vmem>>
    %50 = tpu.memref_squeeze %49 : memref<1x4096xf32, #tpu.memory_space<vmem>> -> memref<4096xf32, #tpu.memory_space<vmem>>
    tpu.enqueue_dma source(%48 : memref<4096xf32, #tpu.memory_space<any>>) target(%50 : memref<4096xf32, #tpu.memory_space<vmem>>) target_semaphore(%arg4 : memref<!tpu.dma_semaphore, #tpu.memory_space<semaphore_mem>>)
    %c7_i32 = arith.constant 7 : i32
    %51 = arith.addi %1, %c7_i32 : i32
    %52 = arith.index_cast %51 : i32 to index
    %53 = memref.load %arg1[%52] : memref<16xi32, #tpu.memory_space<smem>>
    %c0_i32_14 = arith.constant 0 : i32
    %54 = tpu.memref_slice %arg2[%53, %c0_i32_14] : memref<32000x4096xf32, #tpu.memory_space<any>> -> memref<1x4096xf32, #tpu.memory_space<any>>
    %55 = tpu.memref_squeeze %54 : memref<1x4096xf32, #tpu.memory_space<any>> -> memref<4096xf32, #tpu.memory_space<any>>
    %c0_i32_15 = arith.constant 0 : i32
    %56 = tpu.memref_slice %arg3[%c7_i32, %c0_i32_15] : memref<8x4096xf32, #tpu.memory_space<vmem>> -> memref<1x4096xf32, #tpu.memory_space<vmem>>
    %57 = tpu.memref_squeeze %56 : memref<1x4096xf32, #tpu.memory_space<vmem>> -> memref<4096xf32, #tpu.memory_space<vmem>>
    tpu.enqueue_dma source(%55 : memref<4096xf32, #tpu.memory_space<any>>) target(%57 : memref<4096xf32, #tpu.memory_space<vmem>>) target_semaphore(%arg4 : memref<!tpu.dma_semaphore, #tpu.memory_space<semaphore_mem>>)
    %c8_i32_16 = arith.constant 8 : i32
    %c0_i32_17 = arith.constant 0 : i32
    %c0_i32_18 = arith.constant 0 : i32
    %c0_i32_19 = arith.constant 0 : i32
    %58 = tpu.memref_slice %arg2[%c0_i32_18, %c0_i32_19] : memref<32000x4096xf32, #tpu.memory_space<any>> -> memref<1x4096xf32, #tpu.memory_space<any>>
    %59 = tpu.memref_squeeze %58 : memref<1x4096xf32, #tpu.memory_space<any>> -> memref<4096xf32, #tpu.memory_space<any>>
    %c0_i32_20 = arith.constant 0 : i32
    %60 = tpu.memref_slice %arg3[%c0_i32_17, %c0_i32_20] : memref<8x4096xf32, #tpu.memory_space<vmem>> -> memref<1x4096xf32, #tpu.memory_space<vmem>>
    %61 = tpu.memref_squeeze %60 : memref<1x4096xf32, #tpu.memory_space<vmem>> -> memref<4096xf32, #tpu.memory_space<vmem>>
    tpu.wait_dma2 semaphore(%arg4 : memref<!tpu.dma_semaphore, #tpu.memory_space<semaphore_mem>>) src(%59 : memref<4096xf32, #tpu.memory_space<any>>) dst(%61 : memref<4096xf32, #tpu.memory_space<vmem>>)
    %c1_i32_21 = arith.constant 1 : i32
    %c0_i32_22 = arith.constant 0 : i32
    %c0_i32_23 = arith.constant 0 : i32
    %62 = tpu.memref_slice %arg2[%c0_i32_22, %c0_i32_23] : memref<32000x4096xf32, #tpu.memory_space<any>> -> memref<1x4096xf32, #tpu.memory_space<any>>
    %63 = tpu.memref_squeeze %62 : memref<1x4096xf32, #tpu.memory_space<any>> -> memref<4096xf32, #tpu.memory_space<any>>
    %c0_i32_24 = arith.constant 0 : i32
    %64 = tpu.memref_slice %arg3[%c1_i32_21, %c0_i32_24] : memref<8x4096xf32, #tpu.memory_space<vmem>> -> memref<1x4096xf32, #tpu.memory_space<vmem>>
    %65 = tpu.memref_squeeze %64 : memref<1x4096xf32, #tpu.memory_space<vmem>> -> memref<4096xf32, #tpu.memory_space<vmem>>
    tpu.wait_dma2 semaphore(%arg4 : memref<!tpu.dma_semaphore, #tpu.memory_space<semaphore_mem>>) src(%63 : memref<4096xf32, #tpu.memory_space<any>>) dst(%65 : memref<4096xf32, #tpu.memory_space<vmem>>)
    %c2_i32_25 = arith.constant 2 : i32
    %c0_i32_26 = arith.constant 0 : i32
    %c0_i32_27 = arith.constant 0 : i32
    %66 = tpu.memref_slice %arg2[%c0_i32_26, %c0_i32_27] : memref<32000x4096xf32, #tpu.memory_space<any>> -> memref<1x4096xf32, #tpu.memory_space<any>>
    %67 = tpu.memref_squeeze %66 : memref<1x4096xf32, #tpu.memory_space<any>> -> memref<4096xf32, #tpu.memory_space<any>>
    %c0_i32_28 = arith.constant 0 : i32
    %68 = tpu.memref_slice %arg3[%c2_i32_25, %c0_i32_28] : memref<8x4096xf32, #tpu.memory_space<vmem>> -> memref<1x4096xf32, #tpu.memory_space<vmem>>
    %69 = tpu.memref_squeeze %68 : memref<1x4096xf32, #tpu.memory_space<vmem>> -> memref<4096xf32, #tpu.memory_space<vmem>>
    tpu.wait_dma2 semaphore(%arg4 : memref<!tpu.dma_semaphore, #tpu.memory_space<semaphore_mem>>) src(%67 : memref<4096xf32, #tpu.memory_space<any>>) dst(%69 : memref<4096xf32, #tpu.memory_space<vmem>>)
    %c3_i32_29 = arith.constant 3 : i32
    %c0_i32_30 = arith.constant 0 : i32
    %c0_i32_31 = arith.constant 0 : i32
    %70 = tpu.memref_slice %arg2[%c0_i32_30, %c0_i32_31] : memref<32000x4096xf32, #tpu.memory_space<any>> -> memref<1x4096xf32, #tpu.memory_space<any>>
    %71 = tpu.memref_squeeze %70 : memref<1x4096xf32, #tpu.memory_space<any>> -> memref<4096xf32, #tpu.memory_space<any>>
    %c0_i32_32 = arith.constant 0 : i32
    %72 = tpu.memref_slice %arg3[%c3_i32_29, %c0_i32_32] : memref<8x4096xf32, #tpu.memory_space<vmem>> -> memref<1x4096xf32, #tpu.memory_space<vmem>>
    %73 = tpu.memref_squeeze %72 : memref<1x4096xf32, #tpu.memory_space<vmem>> -> memref<4096xf32, #tpu.memory_space<vmem>>
    tpu.wait_dma2 semaphore(%arg4 : memref<!tpu.dma_semaphore, #tpu.memory_space<semaphore_mem>>) src(%71 : memref<4096xf32, #tpu.memory_space<any>>) dst(%73 : memref<4096xf32, #tpu.memory_space<vmem>>)
    %c4_i32_33 = arith.constant 4 : i32
    %c0_i32_34 = arith.constant 0 : i32
    %c0_i32_35 = arith.constant 0 : i32
    %74 = tpu.memref_slice %arg2[%c0_i32_34, %c0_i32_35] : memref<32000x4096xf32, #tpu.memory_space<any>> -> memref<1x4096xf32, #tpu.memory_space<any>>
    %75 = tpu.memref_squeeze %74 : memref<1x4096xf32, #tpu.memory_space<any>> -> memref<4096xf32, #tpu.memory_space<any>>
    %c0_i32_36 = arith.constant 0 : i32
    %76 = tpu.memref_slice %arg3[%c4_i32_33, %c0_i32_36] : memref<8x4096xf32, #tpu.memory_space<vmem>> -> memref<1x4096xf32, #tpu.memory_space<vmem>>
    %77 = tpu.memref_squeeze %76 : memref<1x4096xf32, #tpu.memory_space<vmem>> -> memref<4096xf32, #tpu.memory_space<vmem>>
    tpu.wait_dma2 semaphore(%arg4 : memref<!tpu.dma_semaphore, #tpu.memory_space<semaphore_mem>>) src(%75 : memref<4096xf32, #tpu.memory_space<any>>) dst(%77 : memref<4096xf32, #tpu.memory_space<vmem>>)
    %c5_i32_37 = arith.constant 5 : i32
    %c0_i32_38 = arith.constant 0 : i32
    %c0_i32_39 = arith.constant 0 : i32
    %78 = tpu.memref_slice %arg2[%c0_i32_38, %c0_i32_39] : memref<32000x4096xf32, #tpu.memory_space<any>> -> memref<1x4096xf32, #tpu.memory_space<any>>
    %79 = tpu.memref_squeeze %78 : memref<1x4096xf32, #tpu.memory_space<any>> -> memref<4096xf32, #tpu.memory_space<any>>
    %c0_i32_40 = arith.constant 0 : i32
    %80 = tpu.memref_slice %arg3[%c5_i32_37, %c0_i32_40] : memref<8x4096xf32, #tpu.memory_space<vmem>> -> memref<1x4096xf32, #tpu.memory_space<vmem>>
    %81 = tpu.memref_squeeze %80 : memref<1x4096xf32, #tpu.memory_space<vmem>> -> memref<4096xf32, #tpu.memory_space<vmem>>
    tpu.wait_dma2 semaphore(%arg4 : memref<!tpu.dma_semaphore, #tpu.memory_space<semaphore_mem>>) src(%79 : memref<4096xf32, #tpu.memory_space<any>>) dst(%81 : memref<4096xf32, #tpu.memory_space<vmem>>)
    %c6_i32_41 = arith.constant 6 : i32
    %c0_i32_42 = arith.constant 0 : i32
    %c0_i32_43 = arith.constant 0 : i32
    %82 = tpu.memref_slice %arg2[%c0_i32_42, %c0_i32_43] : memref<32000x4096xf32, #tpu.memory_space<any>> -> memref<1x4096xf32, #tpu.memory_space<any>>
    %83 = tpu.memref_squeeze %82 : memref<1x4096xf32, #tpu.memory_space<any>> -> memref<4096xf32, #tpu.memory_space<any>>
    %c0_i32_44 = arith.constant 0 : i32
    %84 = tpu.memref_slice %arg3[%c6_i32_41, %c0_i32_44] : memref<8x4096xf32, #tpu.memory_space<vmem>> -> memref<1x4096xf32, #tpu.memory_space<vmem>>
    %85 = tpu.memref_squeeze %84 : memref<1x4096xf32, #tpu.memory_space<vmem>> -> memref<4096xf32, #tpu.memory_space<vmem>>
    tpu.wait_dma2 semaphore(%arg4 : memref<!tpu.dma_semaphore, #tpu.memory_space<semaphore_mem>>) src(%83 : memref<4096xf32, #tpu.memory_space<any>>) dst(%85 : memref<4096xf32, #tpu.memory_space<vmem>>)
    %c7_i32_45 = arith.constant 7 : i32
    %c0_i32_46 = arith.constant 0 : i32
    %c0_i32_47 = arith.constant 0 : i32
    %86 = tpu.memref_slice %arg2[%c0_i32_46, %c0_i32_47] : memref<32000x4096xf32, #tpu.memory_space<any>> -> memref<1x4096xf32, #tpu.memory_space<any>>
    %87 = tpu.memref_squeeze %86 : memref<1x4096xf32, #tpu.memory_space<any>> -> memref<4096xf32, #tpu.memory_space<any>>
    %c0_i32_48 = arith.constant 0 : i32
    %88 = tpu.memref_slice %arg3[%c7_i32_45, %c0_i32_48] : memref<8x4096xf32, #tpu.memory_space<vmem>> -> memref<1x4096xf32, #tpu.memory_space<vmem>>
    %89 = tpu.memref_squeeze %88 : memref<1x4096xf32, #tpu.memory_space<vmem>> -> memref<4096xf32, #tpu.memory_space<vmem>>
    tpu.wait_dma2 semaphore(%arg4 : memref<!tpu.dma_semaphore, #tpu.memory_space<semaphore_mem>>) src(%87 : memref<4096xf32, #tpu.memory_space<any>>) dst(%89 : memref<4096xf32, #tpu.memory_space<vmem>>)
    %c8_i32_49 = arith.constant 8 : i32
    return
  }
  func.func @transform_1(%arg0: i32, %arg1: memref<16xi32, #tpu.memory_space<smem>>) -> (i32, i32) {
    %c0_i32 = arith.constant 0 : i32
    %c0_i32_0 = arith.constant 0 : i32
    return %arg0, %c0_i32 : i32, i32
  }
}

</mosaic_0001>

<llo_original>
// kernel: tpu_custom_call.1
$region0: #{tpu_custom_call.1}
  #allocation0 [shape = 'u32[]', space=smem, size = 0x4, offset = 0x4, fixed_abs, tag = 'smem constant byte address 0x4 - core index']
  #allocation1 [shape = 'u32[144,128]{1,0:T(1,128)}', space=vmem, size = 0x12000, scoped, tag = 'internal scratch']
  #allocation2 [shape = 's32[1]{0}', space=sflag, size = 0x4, scoped, tag = 'scratch operand']
  #allocation3 [shape = 's32[1]{0}', space=sflag, size = 0x4, scoped, tag = 'scoped memory for tpu_custom_call.1']
  #allocation4 [shape = 'u8[512]{0}', space=smem, size = 0x200, scoped, tag = 'prefetched SMEM operand 0']
  #allocation7 [shape = 's32[]', space=sflag, size = 0x4, offset = 0, fixed_abs, tag = 'sflag constant byte address 0x0 - dummy sync flag']
  #allocation8 [shape = 's32[]', space=sflag, size = 0x4, offset = 0, fixed_abs, tag = 'sflag constant byte address 0x0 - dummy sync flag']
  #allocation9 [shape = 's32[]', space=sflag, size = 0x4, offset = 0, fixed_abs, tag = 'sflag constant byte address 0x0 - dummy sync flag']
  #allocation10 [shape = 's32[]', space=sflag, size = 0x4, offset = 0, fixed_abs, tag = 'sflag constant byte address 0x0 - dummy sync flag']
  #allocation11 [shape = 's32[]', space=sflag, size = 0x4, offset = 0, fixed_abs, tag = 'sflag constant byte address 0x0 - dummy sync flag']
  #allocation12 [shape = 's32[]', space=sflag, size = 0x4, offset = 0, fixed_abs, tag = 'sflag constant byte address 0x0 - dummy sync flag']
  #allocation13 [shape = 's32[]', space=sflag, size = 0x4, offset = 0, fixed_abs, tag = 'sflag constant byte address 0x0 - dummy sync flag']
  #allocation14 [shape = 's32[]', space=sflag, size = 0x4, offset = 0, fixed_abs, tag = 'sflag constant byte address 0x0 - dummy sync flag']
  %s0 = inlined_call_operand.hbm [shape: s32[16], index: 0, kind: input, shape index: {}]
  %s1 = inlined_call_operand.hbm [shape: f32[32000,4096], index: 1, kind: input, shape index: {}]
  %s2 = inlined_call_operand.hbm [shape: f32[16,4096], index: 2, kind: output, shape index: {}]
  %s3 = sld [smem:[#allocation0]]
  $region25: #{tpu_custom_call.1} parent=0
    _
  %s5 = ssub.s32 1, %s3
  %s6 = scalar_select 0, %s5, %s3
  %8 = dma.hbm_to_smem %s0, 16, [#allocation4], [#allocation3]
  %9 = dma.done [#allocation3], 16
  %10 = sfence
  $region1: #{tpu_custom_call.1} parent=0
    #allocation5 [shape = 'u8[262144]{0}', space=vmem, size = 0x40000, scoped, tag = 'output window, operand 0']
    #allocation6 [shape = 's32[2]{0}', space=sflag, size = 0x8, scoped, tag = 'scoped memory for tpu_custom_call.1']
    %11 = vsyncpa [#allocation6], 0
    %s12 = scalar_lea.sflag [#allocation6], 1
    %13 = vsyncpa %s12, 0
    loop: start=0, step=1, limit=3
    $region2: #{tpu_custom_call.1} parent=1 // loop_pre_header
      _
    $region3: #{tpu_custom_call.1} parent=1 // loop_header
      %s15 = sphi 0, %s19
      %p16 = scmp.ge.s32.totalorder %s15, 3
      %s24 = sphi 0, %s26
      %s27 = sphi 0, %s24
      %s37 = sphi 0, %s27
    $region4: #{tpu_custom_call.1} parent=1 // loop_header_branch
      %18 = sbr.rel (%p16) target = $region8
    $region5: #{tpu_custom_call.1} parent=1 // loop_body
      %s20 = ssub.s32 %s15, 1
      %s21 = sadd.s32 %s15, 1
      %s22 = ssub.s32 %s15, %s21
      %p23 = scmp.eq.s32.totalorder %s22, 0
      %s25 = sadd.s32 %s24, 1
      %s26 = scalar_select %p23, %s24, %s25
      %p28 = pneg %p23
      %p29 = scmp.eq.s32.totalorder %s15, 1
      %p30 = por %p28, %p29
      %p31 = scmp.ne.s32.totalorder %s24, %s27
      %p32 = scmp.eq.s32.totalorder %s15, 0
      %p33 = por %p31, %p32
      %p34 = scmp.ne.s32.totalorder %s24, %s27
      %p35 = scmp.eq.s32.totalorder %s20, 1
      %p36 = por %p34, %p35
      %p38 = scmp.ne.s32.totalorder %s27, %s37
      %p39 = scmp.eq.s32.totalorder %s20, 0
      %p40 = por %p38, %p39
      %p41 = scmp.lt.s32.totalorder %s15, 2
      // Predicated region
      $region9: #{tpu_custom_call.1} parent=5 // pred_check
        %p42 = pneg %p41
      $region10: #{tpu_custom_call.1} parent=5 // pred_check_branch
        %44 = sbr.rel (%p42) target = $region12
      $region11: #{tpu_custom_call.1} parent=5 // pred_region
        %p45 = pneg %p33
        %p46 = pneg %p30
        %s47 = sand.u32 %s24, 1
        %s48 = scalar_lea.sflag [#allocation6], %s47
        %s49 = sand.u32 %s24, 1
        %s50 = smul.addr %s49, 256
        %s51 = scalar_lea.vmem [#allocation5], %s50
        %s52 = smul.u32 %s15, 8
        %s53 = sld [smem:[#allocation4 + %s52]]
        %s54 = sshrl.u32 %s53, 3
        %s55 = sand.u32 %s53, 7
        %s56 = smul.u32 %s54, 256
        %s57 = sadd.s32 %s55, %s56
        %s58 = smul.addr %s57, 16
        %s59 = scalar_lea.hbm %s1, %s58
        %s61 = sshll.u32 %s51, 4
        %s62 = int_to_ptr.vmem [resolvable:$true] %s61
        %64 = dma.hbm_to_vmem [thread:$0]  %s59, 512, %s62, [#allocation2], 128, 128, 1
        %s65 = sadd.s32 %s52, 1
        %s66 = sld [smem:[#allocation4 + %s65]]
        %s67 = sshrl.u32 %s66, 3
        %s68 = sand.u32 %s66, 7
        %s69 = smul.u32 %s67, 256
        %s70 = sadd.s32 %s68, %s69
        %s71 = smul.addr %s70, 16
        %s72 = scalar_lea.hbm %s1, %s71
        %s73 = scalar_lea.vmem %s51, 1 [#allocation5]
        %s75 = sshll.u32 %s73, 4
        %s76 = int_to_ptr.vmem [resolvable:$true] %s75
        %78 = dma.hbm_to_vmem [thread:$0]  %s72, 512, %s76, [#allocation2], 128, 128, 1
        %s79 = sadd.s32 %s52, 2
        %s80 = sld [smem:[#allocation4 + %s79]]
        %s81 = sshrl.u32 %s80, 3
        %s82 = sand.u32 %s80, 7
        %s83 = smul.u32 %s81, 256
        %s84 = sadd.s32 %s82, %s83
        %s85 = smul.addr %s84, 16
        %s86 = scalar_lea.hbm %s1, %s85
        %s87 = scalar_lea.vmem %s51, 2 [#allocation5]
        %s89 = sshll.u32 %s87, 4
        %s90 = int_to_ptr.vmem [resolvable:$true] %s89
        %92 = dma.hbm_to_vmem [thread:$0]  %s86, 512, %s90, [#allocation2], 128, 128, 1
        %s93 = sadd.s32 %s52, 3
        %s94 = sld [smem:[#allocation4 + %s93]]
        %s95 = sshrl.u32 %s94, 3
        %s96 = sand.u32 %s94, 7
        %s97 = smul.u32 %s95, 256
        %s98 = sadd.s32 %s96, %s97
        %s99 = smul.addr %s98, 16
        %s100 = scalar_lea.hbm %s1, %s99
        %s101 = scalar_lea.vmem %s51, 3 [#allocation5]
        %s103 = sshll.u32 %s101, 4
        %s104 = int_to_ptr.vmem [resolvable:$true] %s103
        %106 = dma.hbm_to_vmem [thread:$0]  %s100, 512, %s104, [#allocation2], 128, 128, 1
        %s107 = sadd.s32 %s52, 4
        %s108 = sld [smem:[#allocation4 + %s107]]
        %s109 = sshrl.u32 %s108, 3
        %s110 = sand.u32 %s108, 7
        %s111 = smul.u32 %s109, 256
        %s112 = sadd.s32 %s110, %s111
        %s113 = smul.addr %s112, 16
        %s114 = scalar_lea.hbm %s1, %s113
        %s115 = scalar_lea.vmem %s51, 4 [#allocation5]
        %s117 = sshll.u32 %s115, 4
        %s118 = int_to_ptr.vmem [resolvable:$true] %s117
        %120 = dma.hbm_to_vmem [thread:$0]  %s114, 512, %s118, [#allocation2], 128, 128, 1
        %s121 = sadd.s32 %s52, 5
        %s122 = sld [smem:[#allocation4 + %s121]]
        %s123 = sshrl.u32 %s122, 3
        %s124 = sand.u32 %s122, 7
        %s125 = smul.u32 %s123, 256
        %s126 = sadd.s32 %s124, %s125
        %s127 = smul.addr %s126, 16
        %s128 = scalar_lea.hbm %s1, %s127
        %s129 = scalar_lea.vmem %s51, 5 [#allocation5]
        %s131 = sshll.u32 %s129, 4
        %s132 = int_to_ptr.vmem [resolvable:$true] %s131
        %134 = dma.hbm_to_vmem [thread:$0]  %s128, 512, %s132, [#allocation2], 128, 128, 1
        %s135 = sadd.s32 %s52, 6
        %s136 = sld [smem:[#allocation4 + %s135]]
        %s137 = sshrl.u32 %s136, 3
        %s138 = sand.u32 %s136, 7
        %s139 = smul.u32 %s137, 256
        %s140 = sadd.s32 %s138, %s139
        %s141 = smul.addr %s140, 16
        %s142 = scalar_lea.hbm %s1, %s141
        %s143 = scalar_lea.vmem %s51, 6 [#allocation5]
        %s145 = sshll.u32 %s143, 4
        %s146 = int_to_ptr.vmem [resolvable:$true] %s145
        %148 = dma.hbm_to_vmem [thread:$0]  %s142, 512, %s146, [#allocation2], 128, 128, 1
        %s149 = sadd.s32 %s52, 7
        %s150 = sld [smem:[#allocation4 + %s149]]
        %s151 = sshrl.u32 %s150, 3
        %s152 = sand.u32 %s150, 7
        %s153 = smul.u32 %s151, 256
        %s154 = sadd.s32 %s152, %s153
        %s155 = smul.addr %s154, 16
        %s156 = scalar_lea.hbm %s1, %s155
        %s157 = scalar_lea.vmem %s51, 7 [#allocation5]
        %s159 = sshll.u32 %s157, 4
        %s160 = int_to_ptr.vmem [resolvable:$true] %s159
        %162 = dma.hbm_to_vmem [thread:$0]  %s156, 512, %s160, [#allocation2], 128, 128, 1
        %164 = dma.done [#allocation2], 512
        %166 = dma.done [#allocation2], 512
        %168 = dma.done [#allocation2], 512
        %170 = dma.done [#allocation2], 512
        %172 = dma.done [#allocation2], 512
        %174 = dma.done [#allocation2], 512
        %176 = dma.done [#allocation2], 512
        %178 = dma.done [#allocation2], 512
        %s179 = sand.u32 %s24, 1
        %s180 = scalar_lea.sflag [#allocation6], %s179
        %s181 = sand.u32 %s24, 1
        %s182 = smul.addr %s181, 256
        %s183 = scalar_lea.vmem [#allocation5], %s182
        // Predicated region
        $region13: #{tpu_custom_call.1} parent=11 // pred_check
          %p184 = pneg %p30
        $region14: #{tpu_custom_call.1} parent=11 // pred_check_branch
          %186 = sbr.rel (%p184) target = $region16
        $region15: #{tpu_custom_call.1} parent=11 // pred_region
          %s188 = ssub.s32 4096, 4096
          %189 = vsyncadd %s180, %s188
          %s190 = smul.addr %s15, 32
          %s191 = smul.addr %s190, 128
          %s192 = scalar_lea.hbm %s2, %s191
          %s194 = sshll.u32 %s183, 4
          %s195 = int_to_ptr.vmem [resolvable:$true] %s194
          %197 = dma.vmem_to_hbm [thread:$0]  %s195, 4096, %s192, %s180
        $region16: #{tpu_custom_call.1} parent=11 // pred_fallthru
          _
      $region12: #{tpu_custom_call.1} parent=5 // pred_fallthru
        _
      %p198 = scmp.le.s32.totalorder 1, %s15
      // Predicated region
      $region17: #{tpu_custom_call.1} parent=5 // pred_check
        %p199 = pneg %p198
      $region18: #{tpu_custom_call.1} parent=5 // pred_check_branch
        %201 = sbr.rel (%p199) target = $region20
      $region19: #{tpu_custom_call.1} parent=5 // pred_region
        %s202 = ssub.s32 %s15, 1
        // Predicated region
        $region21: #{tpu_custom_call.1} parent=19 // pred_check
          %p203 = pneg %p36
        $region22: #{tpu_custom_call.1} parent=19 // pred_check_branch
          %205 = sbr.rel (%p203) target = $region24
        $region23: #{tpu_custom_call.1} parent=19 // pred_region
          %s206 = sand.u32 %s27, 1
          %s207 = scalar_lea.sflag [#allocation6], %s206
          %s208 = sand.u32 %s27, 1
          %s209 = smul.addr %s208, 256
          %s210 = scalar_lea.vmem [#allocation5], %s209
          %211 = dma.done %s207, 4096
        $region24: #{tpu_custom_call.1} parent=19 // pred_fallthru
          _
      $region20: #{tpu_custom_call.1} parent=5 // pred_fallthru
        _
    $region6: #{tpu_custom_call.1} parent=1 // loop_footer
      %s19 = sadd.s32 1, %s15
    $region7: #{tpu_custom_call.1} parent=1 // loop_footer_branch
      %14 = sbr.rel target = $region3
    $region8: #{tpu_custom_call.1} parent=1 // loop_exit
      _
    %212 = vsyncpa [#allocation6], 1
    %s213 = scalar_lea.sflag [#allocation6], 1
    %214 = vsyncpa %s213, 1
  %215 = vsyncmov [#allocation2]
  %s216 = vpop.sfrf %215
  %p217 = scmp.eq.s32.totalorder %s216, 0
  %p218 = pneg %p217
  %220 = shalt.err (%p218)

</llo_original>
